<compile_context>
chip_gen: v7x
topology: tpu7x:2x2x1
jax: 0.10.0
libtpu: 0.0.40
codegen_flags: <defaults>
</compile_context>

<pallas_src>
import math

import jax
import jax.numpy as jnp
from jax.experimental import pallas as pl
from jax.experimental.pallas import tpu as pltpu


def lstm_decoder_kernel(c_ref, wih_ref, whh_ref, b_ref, wlin_ref, blin_ref,
                        out_ref, hs_scr):
    B, H = c_ref.shape
    T = out_ref.shape[0] // B          # static

    x = c_ref[...]
    # Loop-invariant input contribution to the gates (bias pre-summed).
    x_gates = (jnp.dot(x, wih_ref[...], preferred_element_type=jnp.float32)
               + b_ref[...])
    whh = whh_ref[...]

    def cell(gates, c_prev):
        # Full-width activations on the [B, 4H] tile, then lane slices.
        sg = jax.nn.sigmoid(gates)
        th = jnp.tanh(gates)
        i_g = sg[:, 0 * H:1 * H]
        f_g = sg[:, 1 * H:2 * H]
        g_g = th[:, 2 * H:3 * H]
        o_g = sg[:, 3 * H:4 * H]
        if c_prev is None:                       # peeled first step: c_prev == 0
            c_new = i_g * g_g
        else:
            c_new = f_g * c_prev + i_g * g_g
        h_new = o_g * jnp.tanh(c_new)
        return h_new, c_new

    # ---- Step 0 (peeled): h0 = c0 = 0, recurrent matmul contributes nothing.
    h, c = cell(x_gates, None)
    hs_scr[pl.ds(0, B), :] = h                   # write-only staging

    # ---- Steps 1..T-1: recurrent state stays in vregs; loop fully unrolled.
    for t in range(1, T):
        gates = x_gates + jnp.dot(h, whh, preferred_element_type=jnp.float32)
        h, c = cell(gates, c)
        # Staging store is write-only inside the loop -> off the critical path.
        hs_scr[pl.ds(t * B, B), :] = h

    # One projection matmul + one dense store for the whole output slab.
    y = (jnp.dot(hs_scr[...], wlin_ref[...], preferred_element_type=jnp.float32)
         + blin_ref[...])
    out_ref[...] = y.astype(out_ref.dtype)


def lstm_decoder(C, params, max_seq_len):
    """Pallas implementation of LstmDecoder.forward. Returns [T, B, O]."""
    B, H = C.shape
    O = params["w_lin"].shape[0]
    T = max_seq_len

    wih_t = params["w_ih"].T                                  # [H, 4H]
    whh_t = params["w_hh"].T                                  # [H, 4H]
    b = (params["b_ih"] + params["b_hh"])[None, :]            # [1, 4H]
    wlin_t = params["w_lin"].T                                # [H, O]
    blin = params["b_lin"][None, :]                           # [1, O]

    flops = (2 * B * H * (4 * H)                  # x_gates (once)
             + (T - 1) * 2 * B * H * (4 * H)      # per-step h @ W_hh^T (peeled)
             + 2 * (T * B) * H * O)               # hoisted projection
    transcendentals = T * B * (4 * H + 4 * H + H)   # sigmoid + tanh(gates) + tanh(c)
    bytes_accessed = 4 * (C.size + wih_t.size + whh_t.size + b.size
                          + wlin_t.size + blin.size + T * B * O)

    out2d = pl.pallas_call(
        lstm_decoder_kernel,
        out_shape=jax.ShapeDtypeStruct((T * B, O), jnp.float32),
        scratch_shapes=[pltpu.VMEM((T * B, H), jnp.float32)],   # staged hiddens
        cost_estimate=pl.CostEstimate(flops=flops,
                                      transcendentals=transcendentals,
                                      bytes_accessed=bytes_accessed),
    )(C, wih_t, whh_t, b, wlin_t, blin)

    # Row index of out2d is t*B + b, so this reshape reproduces torch.cat(dim=0).
    return out2d.reshape(T, B, O)


def lstm_decoder_ref(C, params, T):
    """Pure-JAX reference matching PyTorch nn.LSTM + nn.Linear semantics."""
    def cell(carry, _):
        h, c = carry
        gates = (C @ params["w_ih"].T + params["b_ih"]
                 + h @ params["w_hh"].T + params["b_hh"])
        i, f, g, o = jnp.split(gates, 4, axis=1)
        i = jax.nn.sigmoid(i)
        f = jax.nn.sigmoid(f)
        g = jnp.tanh(g)
        o = jax.nn.sigmoid(o)
        c = f * c + i * g
        h = o * jnp.tanh(c)
        y = h @ params["w_lin"].T + params["b_lin"]
        return (h, c), y

    init = (jnp.zeros_like(C), jnp.zeros_like(C))
    _, ys = jax.lax.scan(cell, init, None, length=T)
    return ys


if __name__ == "__main__":
    B, H, O, T = 2, 32, 16, 8   # batch, hidden_dim, output_dim, max_seq_len

    key = jax.random.PRNGKey(0)
    k = jax.random.split(key, 7)
    s = 1.0 / math.sqrt(H)      # PyTorch LSTM/Linear default uniform bound
    params = {
        "w_ih":  jax.random.uniform(k[0], (4 * H, H), jnp.float32, -s, s),
        "w_hh":  jax.random.uniform(k[1], (4 * H, H), jnp.float32, -s, s),
        "b_ih":  jax.random.uniform(k[2], (4 * H,),   jnp.float32, -s, s),
        "b_hh":  jax.random.uniform(k[3], (4 * H,),   jnp.float32, -s, s),
        "w_lin": jax.random.uniform(k[4], (O, H),     jnp.float32, -s, s),
        "b_lin": jax.random.uniform(k[5], (O,),       jnp.float32, -s, s),
    }
    C = jax.random.normal(k[6], (B, H), jnp.float32)

    out = jax.block_until_ready(lstm_decoder(C, params, T))
    ref = lstm_decoder_ref(C, params, T)

    assert out.shape == (T, B, O), out.shape
    assert jnp.allclose(out, ref, atol=1e-4, rtol=1e-4), \
        float(jnp.max(jnp.abs(out - ref)))
    print("KERNEL_OK")
</pallas_src>

<mosaic_0001>
module attributes {stable_mosaic.version = 11 : i64} {
  func.func @lstm_decoder_kernel(%arg0: memref<2x32xf32, #tpu.memory_space<vmem>>, %arg1: memref<32x128xf32, #tpu.memory_space<vmem>>, %arg2: memref<32x128xf32, #tpu.memory_space<vmem>>, %arg3: memref<1x128xf32, #tpu.memory_space<vmem>>, %arg4: memref<32x16xf32, #tpu.memory_space<vmem>>, %arg5: memref<1x16xf32, #tpu.memory_space<vmem>>, %arg6: memref<16x16xf32, #tpu.memory_space<vmem>>, %arg7: memref<16x32xf32, #tpu.memory_space<vmem>>) attributes {dimension_semantics = [], scalar_prefetch = 0 : i64, scratch_operands = 1 : i64, tpu.core_type = #tpu.core_type<tc>} {
    %c0 = arith.constant 0 : index
    %c0_0 = arith.constant 0 : index
    %0 = vector.load %arg0[%c0, %c0_0] : memref<2x32xf32, #tpu.memory_space<vmem>>, vector<2x32xf32>
    %c0_1 = arith.constant 0 : index
    %c0_2 = arith.constant 0 : index
    %1 = vector.load %arg1[%c0_1, %c0_2] : memref<32x128xf32, #tpu.memory_space<vmem>>, vector<32x128xf32>
    %cst = arith.constant dense<0.000000e+00> : vector<2x128xf32>
    %2 = tpu.matmul %0, %1, %cst {dimension_numbers = #tpu.dot_dimension_numbers<[1], [0], [0], [1], [0, 0, 1, 1], [], []>} : vector<2x32xf32>, vector<32x128xf32>, vector<2x128xf32> -> vector<2x128xf32>
    %c0_3 = arith.constant 0 : index
    %c0_4 = arith.constant 0 : index
    %3 = vector.load %arg3[%c0_3, %c0_4] : memref<1x128xf32, #tpu.memory_space<vmem>>, vector<1x128xf32>
    %4 = vector.broadcast %3 : vector<1x128xf32> to vector<2x128xf32>
    %5 = arith.addf %2, %4 : vector<2x128xf32>
    %c0_5 = arith.constant 0 : index
    %c0_6 = arith.constant 0 : index
    %6 = vector.load %arg2[%c0_5, %c0_6] : memref<32x128xf32, #tpu.memory_space<vmem>>, vector<32x128xf32>
    %7 = arith.negf %5 : vector<2x128xf32>
    %8 = math.exp %7 : vector<2x128xf32>
    %cst_7 = arith.constant 1.000000e+00 : f32
    %9 = vector.broadcast %cst_7 : f32 to vector<2x128xf32>
    %10 = arith.addf %9, %8 : vector<2x128xf32>
    %11 = arith.divf %9, %10 : vector<2x128xf32>
    %12 = math.tanh %5 : vector<2x128xf32>
    %13 = vector.extract_strided_slice %11 {offsets = [0, 0], sizes = [2, 32], strides = [1, 1]} : vector<2x128xf32> to vector<2x32xf32>
    %14 = vector.extract_strided_slice %12 {offsets = [0, 64], sizes = [2, 32], strides = [1, 1]} : vector<2x128xf32> to vector<2x32xf32>
    %15 = vector.extract_strided_slice %11 {offsets = [0, 96], sizes = [2, 32], strides = [1, 1]} : vector<2x128xf32> to vector<2x32xf32>
    %16 = arith.mulf %13, %14 : vector<2x32xf32>
    %17 = math.tanh %16 : vector<2x32xf32>
    %18 = arith.mulf %15, %17 : vector<2x32xf32>
    %c0_8 = arith.constant 0 : index
    %c0_9 = arith.constant 0 : index
    %19 = vector.load %arg7[%c0_8, %c0_9] : memref<16x32xf32, #tpu.memory_space<vmem>>, vector<2x32xf32>
    tpu.vector_store %arg7[%c0_8, %c0_9], %18 {strides = array<i32>} : memref<16x32xf32, #tpu.memory_space<vmem>>, vector<2x32xf32>,
    %cst_10 = arith.constant dense<0.000000e+00> : vector<2x128xf32>
    %20 = tpu.matmul %18, %6, %cst_10 {dimension_numbers = #tpu.dot_dimension_numbers<[1], [0], [0], [1], [0, 0, 1, 1], [], []>} : vector<2x32xf32>, vector<32x128xf32>, vector<2x128xf32> -> vector<2x128xf32>
    %21 = arith.addf %5, %20 : vector<2x128xf32>
    %22 = arith.negf %21 : vector<2x128xf32>
    %23 = math.exp %22 : vector<2x128xf32>
    %cst_11 = arith.constant 1.000000e+00 : f32
    %24 = vector.broadcast %cst_11 : f32 to vector<2x128xf32>
    %25 = arith.addf %24, %23 : vector<2x128xf32>
    %26 = arith.divf %24, %25 : vector<2x128xf32>
    %27 = math.tanh %21 : vector<2x128xf32>
    %28 = vector.extract_strided_slice %26 {offsets = [0, 0], sizes = [2, 32], strides = [1, 1]} : vector<2x128xf32> to vector<2x32xf32>
    %29 = vector.extract_strided_slice %26 {offsets = [0, 32], sizes = [2, 32], strides = [1, 1]} : vector<2x128xf32> to vector<2x32xf32>
    %30 = vector.extract_strided_slice %27 {offsets = [0, 64], sizes = [2, 32], strides = [1, 1]} : vector<2x128xf32> to vector<2x32xf32>
    %31 = vector.extract_strided_slice %26 {offsets = [0, 96], sizes = [2, 32], strides = [1, 1]} : vector<2x128xf32> to vector<2x32xf32>
    %32 = arith.mulf %29, %16 : vector<2x32xf32>
    %33 = arith.mulf %28, %30 : vector<2x32xf32>
    %34 = arith.addf %32, %33 : vector<2x32xf32>
    %35 = math.tanh %34 : vector<2x32xf32>
    %36 = arith.mulf %31, %35 : vector<2x32xf32>
    %c2 = arith.constant 2 : index
    %c0_12 = arith.constant 0 : index
    %37 = vector.load %arg7[%c2, %c0_12] : memref<16x32xf32, #tpu.memory_space<vmem>>, vector<2x32xf32>
    tpu.vector_store %arg7[%c2, %c0_12], %36 {strides = array<i32>} : memref<16x32xf32, #tpu.memory_space<vmem>>, vector<2x32xf32>,
    %cst_13 = arith.constant dense<0.000000e+00> : vector<2x128xf32>
    %38 = tpu.matmul %36, %6, %cst_13 {dimension_numbers = #tpu.dot_dimension_numbers<[1], [0], [0], [1], [0, 0, 1, 1], [], []>} : vector<2x32xf32>, vector<32x128xf32>, vector<2x128xf32> -> vector<2x128xf32>
    %39 = arith.addf %5, %38 : vector<2x128xf32>
    %40 = arith.negf %39 : vector<2x128xf32>
    %41 = math.exp %40 : vector<2x128xf32>
    %cst_14 = arith.constant 1.000000e+00 : f32
    %42 = vector.broadcast %cst_14 : f32 to vector<2x128xf32>
    %43 = arith.addf %42, %41 : vector<2x128xf32>
    %44 = arith.divf %42, %43 : vector<2x128xf32>
    %45 = math.tanh %39 : vector<2x128xf32>
    %46 = vector.extract_strided_slice %44 {offsets = [0, 0], sizes = [2, 32], strides = [1, 1]} : vector<2x128xf32> to vector<2x32xf32>
    %47 = vector.extract_strided_slice %44 {offsets = [0, 32], sizes = [2, 32], strides = [1, 1]} : vector<2x128xf32> to vector<2x32xf32>
    %48 = vector.extract_strided_slice %45 {offsets = [0, 64], sizes = [2, 32], strides = [1, 1]} : vector<2x128xf32> to vector<2x32xf32>
    %49 = vector.extract_strided_slice %44 {offsets = [0, 96], sizes = [2, 32], strides = [1, 1]} : vector<2x128xf32> to vector<2x32xf32>
    %50 = arith.mulf %47, %34 : vector<2x32xf32>
    %51 = arith.mulf %46, %48 : vector<2x32xf32>
    %52 = arith.addf %50, %51 : vector<2x32xf32>
    %53 = math.tanh %52 : vector<2x32xf32>
    %54 = arith.mulf %49, %53 : vector<2x32xf32>
    %c4 = arith.constant 4 : index
    %c0_15 = arith.constant 0 : index
    %55 = vector.load %arg7[%c4, %c0_15] : memref<16x32xf32, #tpu.memory_space<vmem>>, vector<2x32xf32>
    tpu.vector_store %arg7[%c4, %c0_15], %54 {strides = array<i32>} : memref<16x32xf32, #tpu.memory_space<vmem>>, vector<2x32xf32>,
    %cst_16 = arith.constant dense<0.000000e+00> : vector<2x128xf32>
    %56 = tpu.matmul %54, %6, %cst_16 {dimension_numbers = #tpu.dot_dimension_numbers<[1], [0], [0], [1], [0, 0, 1, 1], [], []>} : vector<2x32xf32>, vector<32x128xf32>, vector<2x128xf32> -> vector<2x128xf32>
    %57 = arith.addf %5, %56 : vector<2x128xf32>
    %58 = arith.negf %57 : vector<2x128xf32>
    %59 = math.exp %58 : vector<2x128xf32>
    %cst_17 = arith.constant 1.000000e+00 : f32
    %60 = vector.broadcast %cst_17 : f32 to vector<2x128xf32>
    %61 = arith.addf %60, %59 : vector<2x128xf32>
    %62 = arith.divf %60, %61 : vector<2x128xf32>
    %63 = math.tanh %57 : vector<2x128xf32>
    %64 = vector.extract_strided_slice %62 {offsets = [0, 0], sizes = [2, 32], strides = [1, 1]} : vector<2x128xf32> to vector<2x32xf32>
    %65 = vector.extract_strided_slice %62 {offsets = [0, 32], sizes = [2, 32], strides = [1, 1]} : vector<2x128xf32> to vector<2x32xf32>
    %66 = vector.extract_strided_slice %63 {offsets = [0, 64], sizes = [2, 32], strides = [1, 1]} : vector<2x128xf32> to vector<2x32xf32>
    %67 = vector.extract_strided_slice %62 {offsets = [0, 96], sizes = [2, 32], strides = [1, 1]} : vector<2x128xf32> to vector<2x32xf32>
    %68 = arith.mulf %65, %52 : vector<2x32xf32>
    %69 = arith.mulf %64, %66 : vector<2x32xf32>
    %70 = arith.addf %68, %69 : vector<2x32xf32>
    %71 = math.tanh %70 : vector<2x32xf32>
    %72 = arith.mulf %67, %71 : vector<2x32xf32>
    %c6 = arith.constant 6 : index
    %c0_18 = arith.constant 0 : index
    %73 = vector.load %arg7[%c6, %c0_18] : memref<16x32xf32, #tpu.memory_space<vmem>>, vector<2x32xf32>
    tpu.vector_store %arg7[%c6, %c0_18], %72 {strides = array<i32>} : memref<16x32xf32, #tpu.memory_space<vmem>>, vector<2x32xf32>,
    %cst_19 = arith.constant dense<0.000000e+00> : vector<2x128xf32>
    %74 = tpu.matmul %72, %6, %cst_19 {dimension_numbers = #tpu.dot_dimension_numbers<[1], [0], [0], [1], [0, 0, 1, 1], [], []>} : vector<2x32xf32>, vector<32x128xf32>, vector<2x128xf32> -> vector<2x128xf32>
    %75 = arith.addf %5, %74 : vector<2x128xf32>
    %76 = arith.negf %75 : vector<2x128xf32>
    %77 = math.exp %76 : vector<2x128xf32>
    %cst_20 = arith.constant 1.000000e+00 : f32
    %78 = vector.broadcast %cst_20 : f32 to vector<2x128xf32>
    %79 = arith.addf %78, %77 : vector<2x128xf32>
    %80 = arith.divf %78, %79 : vector<2x128xf32>
    %81 = math.tanh %75 : vector<2x128xf32>
    %82 = vector.extract_strided_slice %80 {offsets = [0, 0], sizes = [2, 32], strides = [1, 1]} : vector<2x128xf32> to vector<2x32xf32>
    %83 = vector.extract_strided_slice %80 {offsets = [0, 32], sizes = [2, 32], strides = [1, 1]} : vector<2x128xf32> to vector<2x32xf32>
    %84 = vector.extract_strided_slice %81 {offsets = [0, 64], sizes = [2, 32], strides = [1, 1]} : vector<2x128xf32> to vector<2x32xf32>
    %85 = vector.extract_strided_slice %80 {offsets = [0, 96], sizes = [2, 32], strides = [1, 1]} : vector<2x128xf32> to vector<2x32xf32>
    %86 = arith.mulf %83, %70 : vector<2x32xf32>
    %87 = arith.mulf %82, %84 : vector<2x32xf32>
    %88 = arith.addf %86, %87 : vector<2x32xf32>
    %89 = math.tanh %88 : vector<2x32xf32>
    %90 = arith.mulf %85, %89 : vector<2x32xf32>
    %c8 = arith.constant 8 : index
    %c0_21 = arith.constant 0 : index
    %91 = vector.load %arg7[%c8, %c0_21] : memref<16x32xf32, #tpu.memory_space<vmem>>, vector<2x32xf32>
    tpu.vector_store %arg7[%c8, %c0_21], %90 {strides = array<i32>} : memref<16x32xf32, #tpu.memory_space<vmem>>, vector<2x32xf32>,
    %cst_22 = arith.constant dense<0.000000e+00> : vector<2x128xf32>
    %92 = tpu.matmul %90, %6, %cst_22 {dimension_numbers = #tpu.dot_dimension_numbers<[1], [0], [0], [1], [0, 0, 1, 1], [], []>} : vector<2x32xf32>, vector<32x128xf32>, vector<2x128xf32> -> vector<2x128xf32>
    %93 = arith.addf %5, %92 : vector<2x128xf32>
    %94 = arith.negf %93 : vector<2x128xf32>
    %95 = math.exp %94 : vector<2x128xf32>
    %cst_23 = arith.constant 1.000000e+00 : f32
    %96 = vector.broadcast %cst_23 : f32 to vector<2x128xf32>
    %97 = arith.addf %96, %95 : vector<2x128xf32>
    %98 = arith.divf %96, %97 : vector<2x128xf32>
    %99 = math.tanh %93 : vector<2x128xf32>
    %100 = vector.extract_strided_slice %98 {offsets = [0, 0], sizes = [2, 32], strides = [1, 1]} : vector<2x128xf32> to vector<2x32xf32>
    %101 = vector.extract_strided_slice %98 {offsets = [0, 32], sizes = [2, 32], strides = [1, 1]} : vector<2x128xf32> to vector<2x32xf32>
    %102 = vector.extract_strided_slice %99 {offsets = [0, 64], sizes = [2, 32], strides = [1, 1]} : vector<2x128xf32> to vector<2x32xf32>
    %103 = vector.extract_strided_slice %98 {offsets = [0, 96], sizes = [2, 32], strides = [1, 1]} : vector<2x128xf32> to vector<2x32xf32>
    %104 = arith.mulf %101, %88 : vector<2x32xf32>
    %105 = arith.mulf %100, %102 : vector<2x32xf32>
    %106 = arith.addf %104, %105 : vector<2x32xf32>
    %107 = math.tanh %106 : vector<2x32xf32>
    %108 = arith.mulf %103, %107 : vector<2x32xf32>
    %c10 = arith.constant 10 : index
    %c0_24 = arith.constant 0 : index
    %109 = vector.load %arg7[%c10, %c0_24] : memref<16x32xf32, #tpu.memory_space<vmem>>, vector<2x32xf32>
    tpu.vector_store %arg7[%c10, %c0_24], %108 {strides = array<i32>} : memref<16x32xf32, #tpu.memory_space<vmem>>, vector<2x32xf32>,
    %cst_25 = arith.constant dense<0.000000e+00> : vector<2x128xf32>
    %110 = tpu.matmul %108, %6, %cst_25 {dimension_numbers = #tpu.dot_dimension_numbers<[1], [0], [0], [1], [0, 0, 1, 1], [], []>} : vector<2x32xf32>, vector<32x128xf32>, vector<2x128xf32> -> vector<2x128xf32>
    %111 = arith.addf %5, %110 : vector<2x128xf32>
    %112 = arith.negf %111 : vector<2x128xf32>
    %113 = math.exp %112 : vector<2x128xf32>
    %cst_26 = arith.constant 1.000000e+00 : f32
    %114 = vector.broadcast %cst_26 : f32 to vector<2x128xf32>
    %115 = arith.addf %114, %113 : vector<2x128xf32>
    %116 = arith.divf %114, %115 : vector<2x128xf32>
    %117 = math.tanh %111 : vector<2x128xf32>
    %118 = vector.extract_strided_slice %116 {offsets = [0, 0], sizes = [2, 32], strides = [1, 1]} : vector<2x128xf32> to vector<2x32xf32>
    %119 = vector.extract_strided_slice %116 {offsets = [0, 32], sizes = [2, 32], strides = [1, 1]} : vector<2x128xf32> to vector<2x32xf32>
    %120 = vector.extract_strided_slice %117 {offsets = [0, 64], sizes = [2, 32], strides = [1, 1]} : vector<2x128xf32> to vector<2x32xf32>
    %121 = vector.extract_strided_slice %116 {offsets = [0, 96], sizes = [2, 32], strides = [1, 1]} : vector<2x128xf32> to vector<2x32xf32>
    %122 = arith.mulf %119, %106 : vector<2x32xf32>
    %123 = arith.mulf %118, %120 : vector<2x32xf32>
    %124 = arith.addf %122, %123 : vector<2x32xf32>
    %125 = math.tanh %124 : vector<2x32xf32>
    %126 = arith.mulf %121, %125 : vector<2x32xf32>
    %c12 = arith.constant 12 : index
    %c0_27 = arith.constant 0 : index
    %127 = vector.load %arg7[%c12, %c0_27] : memref<16x32xf32, #tpu.memory_space<vmem>>, vector<2x32xf32>
    tpu.vector_store %arg7[%c12, %c0_27], %126 {strides = array<i32>} : memref<16x32xf32, #tpu.memory_space<vmem>>, vector<2x32xf32>,
    %cst_28 = arith.constant dense<0.000000e+00> : vector<2x128xf32>
    %128 = tpu.matmul %126, %6, %cst_28 {dimension_numbers = #tpu.dot_dimension_numbers<[1], [0], [0], [1], [0, 0, 1, 1], [], []>} : vector<2x32xf32>, vector<32x128xf32>, vector<2x128xf32> -> vector<2x128xf32>
    %129 = arith.addf %5, %128 : vector<2x128xf32>
    %130 = arith.negf %129 : vector<2x128xf32>
    %131 = math.exp %130 : vector<2x128xf32>
    %cst_29 = arith.constant 1.000000e+00 : f32
    %132 = vector.broadcast %cst_29 : f32 to vector<2x128xf32>
    %133 = arith.addf %132, %131 : vector<2x128xf32>
    %134 = arith.divf %132, %133 : vector<2x128xf32>
    %135 = math.tanh %129 : vector<2x128xf32>
    %136 = vector.extract_strided_slice %134 {offsets = [0, 0], sizes = [2, 32], strides = [1, 1]} : vector<2x128xf32> to vector<2x32xf32>
    %137 = vector.extract_strided_slice %134 {offsets = [0, 32], sizes = [2, 32], strides = [1, 1]} : vector<2x128xf32> to vector<2x32xf32>
    %138 = vector.extract_strided_slice %135 {offsets = [0, 64], sizes = [2, 32], strides = [1, 1]} : vector<2x128xf32> to vector<2x32xf32>
    %139 = vector.extract_strided_slice %134 {offsets = [0, 96], sizes = [2, 32], strides = [1, 1]} : vector<2x128xf32> to vector<2x32xf32>
    %140 = arith.mulf %137, %124 : vector<2x32xf32>
    %141 = arith.mulf %136, %138 : vector<2x32xf32>
    %142 = arith.addf %140, %141 : vector<2x32xf32>
    %143 = math.tanh %142 : vector<2x32xf32>
    %144 = arith.mulf %139, %143 : vector<2x32xf32>
    %c14 = arith.constant 14 : index
    %c0_30 = arith.constant 0 : index
    %145 = vector.load %arg7[%c14, %c0_30] : memref<16x32xf32, #tpu.memory_space<vmem>>, vector<2x32xf32>
    tpu.vector_store %arg7[%c14, %c0_30], %144 {strides = array<i32>} : memref<16x32xf32, #tpu.memory_space<vmem>>, vector<2x32xf32>,
    %c0_31 = arith.constant 0 : index
    %c0_32 = arith.constant 0 : index
    %146 = vector.load %arg7[%c0_31, %c0_32] : memref<16x32xf32, #tpu.memory_space<vmem>>, vector<16x32xf32>
    %c0_33 = arith.constant 0 : index
    %c0_34 = arith.constant 0 : index
    %147 = vector.load %arg4[%c0_33, %c0_34] : memref<32x16xf32, #tpu.memory_space<vmem>>, vector<32x16xf32>
    %cst_35 = arith.constant dense<0.000000e+00> : vector<16x16xf32>
    %148 = tpu.matmul %146, %147, %cst_35 {dimension_numbers = #tpu.dot_dimension_numbers<[1], [0], [0], [1], [0, 0, 1, 1], [], []>} : vector<16x32xf32>, vector<32x16xf32>, vector<16x16xf32> -> vector<16x16xf32>
    %c0_36 = arith.constant 0 : index
    %c0_37 = arith.constant 0 : index
    %149 = vector.load %arg5[%c0_36, %c0_37] : memref<1x16xf32, #tpu.memory_space<vmem>>, vector<1x16xf32>
    %150 = vector.broadcast %149 : vector<1x16xf32> to vector<16x16xf32>
    %151 = arith.addf %148, %150 : vector<16x16xf32>
    %c0_38 = arith.constant 0 : index
    %c0_39 = arith.constant 0 : index
    %152 = vector.load %arg6[%c0_38, %c0_39] : memref<16x16xf32, #tpu.memory_space<vmem>>, vector<16x16xf32>
    tpu.vector_store %arg6[%c0_38, %c0_39], %151 {strides = array<i32>} : memref<16x16xf32, #tpu.memory_space<vmem>>, vector<16x16xf32>,
    return
  }
}

</mosaic_0001>

<llo_original>
// kernel: tpu_custom_call.1
$region0: #{tpu_custom_call.1}
  #allocation0 [shape = 'u32[]', space=smem, size = 0x4, offset = 0x4, fixed_abs, tag = 'smem constant byte address 0x4 - core index']
  #allocation1 [shape = 'u32[144,128]{1,0:T(1,128)}', space=vmem, size = 0x12000, scoped, tag = 'internal scratch']
  #allocation2 [shape = 'f32[16,32]{1,0:T(8,128)}', space=vmem, size = 0x2000, scoped, tag = 'scratch operand']
  %s0 = inlined_call_operand.vmem [shape: f32[2,32], index: 0, kind: input, shape index: {}]
  %s1 = inlined_call_operand.vmem [shape: f32[32,128], index: 1, kind: input, shape index: {}]
  %s2 = inlined_call_operand.hbm [shape: f32[32,128], index: 2, kind: input, shape index: {}]
  %s3 = inlined_call_operand.vmem [shape: f32[1,128], index: 3, kind: input, shape index: {}]
  %s4 = inlined_call_operand.vmem [shape: f32[32,16], index: 4, kind: input, shape index: {}]
  %s5 = inlined_call_operand.vmem [shape: f32[1,16], index: 5, kind: input, shape index: {}]
  %s6 = inlined_call_operand.hbm [shape: f32[16,16], index: 6, kind: output, shape index: {}]
  %s7 = sld [smem:[#allocation0]]
  $region38: #{tpu_custom_call.1} parent=0
    _
  %s9 = ssub.s32 1, %s7
  %s10 = scalar_select 0, %s9, %s7
  $region1: #{tpu_custom_call.1} parent=0
    #allocation3 [shape = 'u8[16384]{0}', space=vmem, size = 0x4000, scoped, tag = 'input window, operand 2, single buffered']
    #allocation4 [shape = 's32[1]{0}', space=sflag, size = 0x4, scoped, tag = 'scoped memory for tpu_custom_call.1']
    #allocation5 [shape = 's32[1]{0}', space=sflag, size = 0x4, scoped, tag = 'scoped memory for tpu_custom_call.1']
    #allocation6 [shape = 'u8[8192]{0}', space=vmem, size = 0x2000, scoped, tag = 'output window, operand 0, single buffered']
    %11 = vsyncpa [#allocation4], 0
    %12 = vsyncpa [#allocation5], 0
    // Predicated region
    $region2: #{tpu_custom_call.1} parent=1 // pred_check
      _
    $region3: #{tpu_custom_call.1} parent=1 // pred_check_branch
      %14 = sbr.rel (0) target = $region5
    $region4: #{tpu_custom_call.1} parent=1 // pred_region
      _
    $region5: #{tpu_custom_call.1} parent=1 // pred_fallthru
      _
    // Predicated region
    $region6: #{tpu_custom_call.1} parent=1 // pred_check
      _
    $region7: #{tpu_custom_call.1} parent=1 // pred_check_branch
      %16 = sbr.rel (0) target = $region9
    $region8: #{tpu_custom_call.1} parent=1 // pred_region
      _
    $region9: #{tpu_custom_call.1} parent=1 // pred_fallthru
      _
    // Predicated region
    $region10: #{tpu_custom_call.1} parent=1 // pred_check
      _
    $region11: #{tpu_custom_call.1} parent=1 // pred_check_branch
      %18 = sbr.rel (0) target = $region13
    $region12: #{tpu_custom_call.1} parent=1 // pred_region
      %s20 = ssub.s32 512, 512
      %21 = vsyncadd [#allocation4], %s20
      %s22 = sshll.u32 [#allocation3], 4
      %s23 = int_to_ptr.vmem [resolvable:$true] %s22
      %28 = dma.hbm_to_vmem [thread:$0]  %s2, 512, %s23, [#allocation4], 128, 128, 8
    $region13: #{tpu_custom_call.1} parent=1 // pred_fallthru
      _
    // Predicated region
    $region14: #{tpu_custom_call.1} parent=1 // pred_check
      _
    $region15: #{tpu_custom_call.1} parent=1 // pred_check_branch
      %30 = sbr.rel (0) target = $region17
    $region16: #{tpu_custom_call.1} parent=1 // pred_region
      _
    $region17: #{tpu_custom_call.1} parent=1 // pred_fallthru
      _
    // Predicated region
    $region18: #{tpu_custom_call.1} parent=1 // pred_check
      _
    $region19: #{tpu_custom_call.1} parent=1 // pred_check_branch
      %32 = sbr.rel (0) target = $region21
    $region20: #{tpu_custom_call.1} parent=1 // pred_region
      _
    $region21: #{tpu_custom_call.1} parent=1 // pred_fallthru
      _
    // Predicated region
    $region22: #{tpu_custom_call.1} parent=1 // pred_check
      _
    $region23: #{tpu_custom_call.1} parent=1 // pred_check_branch
      %34 = sbr.rel (0) target = $region25
    $region24: #{tpu_custom_call.1} parent=1 // pred_region
      _
    $region25: #{tpu_custom_call.1} parent=1 // pred_fallthru
      _
    // Predicated region
    $region26: #{tpu_custom_call.1} parent=1 // pred_check
      _
    $region27: #{tpu_custom_call.1} parent=1 // pred_check_branch
      %36 = sbr.rel (0) target = $region29
    $region28: #{tpu_custom_call.1} parent=1 // pred_region
      %37 = dma.done [#allocation4], 512
    $region29: #{tpu_custom_call.1} parent=1 // pred_fallthru
      _
    %v38 = vld [vmem:[%s0] sm:$0x3]
    %v39 = vld [vmem:[%s1] sm:$0xff]
    %v40 = vld [vmem:[%s1 + $0x8] sm:$0xff]
    %v41 = vld [vmem:[%s1 + $0x10] sm:$0xff]
    %v42 = vld [vmem:[%s1 + $0x18] sm:$0xff]
    %v43 = vld [vmem:[%s3] sm:$0x1]
    %v45 = vlaneseq
    %v46 = vshrl.u32 %v45, 7
    %v47 = vsub.s32 0, %v46
    %v48 = vrot.slane %v43, %v47
    %vm50 = vcmask 261120
    %v52 = vsel %vm50, %v38, 0
    %54 = vmatprep.subr.mxu0 0.0
    %55 = vmatpush1.msra.mxu0 %v39
    %56 = vmatprep.subr.mxu0 0.0
    %57 = vmatpush1.msra.mxu0 %v40
    %58 = vmatprep.subr.mxu0 0.0
    %59 = vmatpush1.msra.mxu0 %v41
    %60 = vmatprep.subr.mxu0 0.0
    %61 = vmatpush1.msra.mxu0 %v42
    %62 = vmatprep.subr.mxu0 0.0
    %63 = vmatpush1.msra.mxu0 0.0
    %64 = vmatprep.subr.mxu0 0.0
    %65 = vmatpush1.msra.mxu0 0.0
    %66 = vmatprep.subr.mxu0 0.0
    %67 = vmatpush1.msra.mxu0 0.0
    %68 = vmatprep.subr.mxu0 0.0
    %69 = vmatpush1.msra.mxu0 0.0
    %70 = vmatprep.subr.mxu0 0.0
    %71 = vmatpush1.msra.mxu0 0.0
    %72 = vmatprep.subr.mxu0 0.0
    %73 = vmatpush1.msra.mxu0 0.0
    %74 = vmatprep.subr.mxu0 0.0
    %75 = vmatpush1.msra.mxu0 0.0
    %76 = vmatprep.subr.mxu0 0.0
    %77 = vmatpush1.msra.mxu0 0.0
    %78 = vmatprep.subr.mxu0 0.0
    %79 = vmatpush1.msra.mxu0 0.0
    %80 = vmatprep.subr.mxu0 0.0
    %81 = vmatpush1.msra.mxu0 0.0
    %82 = vmatprep.subr.mxu0 0.0
    %83 = vmatpush1.msra.mxu0 0.0
    %84 = vmatprep.subr.mxu0 0.0
    %85 = vmatpush1.msra.mxu0 0.0
    %86 = vmatprep.subr.mxu0 0.0
    %87 = vmatpush1.msra.mxu0 0.0
    %88 = vmatprep.subr.mxu0 0.0
    %89 = vmatpush1.msra.mxu0 0.0
    %90 = vmatprep.subr.mxu0 0.0
    %91 = vmatpush1.msra.mxu0 0.0
    %92 = vmatprep.subr.mxu0 0.0
    %93 = vmatpush1.msra.mxu0 0.0
    %94 = vmatprep.subr.mxu0 0.0
    %95 = vmatpush1.msra.mxu0 0.0
    %96 = vmatprep.subr.mxu0 0.0
    %97 = vmatpush1.msra.mxu0 0.0
    %98 = vmatprep.subr.mxu0 0.0
    %99 = vmatpush1.msra.mxu0 0.0
    %100 = vmatprep.subr.mxu0 0.0
    %101 = vmatpush1.msra.mxu0 0.0
    %102 = vmatprep.subr.mxu0 0.0
    %103 = vmatpush1.msra.mxu0 0.0
    %104 = vmatprep.subr.mxu0 0.0
    %105 = vmatpush1.msra.mxu0 0.0
    %106 = vmatprep.subr.mxu0 0.0
    %107 = vmatpush1.msra.mxu0 0.0
    %108 = vmatprep.subr.mxu0 0.0
    %109 = vmatpush1.msra.mxu0 0.0
    %110 = vmatprep.subr.mxu0 0.0
    %111 = vmatpush1.msra.mxu0 0.0
    %112 = vmatprep.subr.mxu0 0.0
    %113 = vmatpush1.msra.mxu0 0.0
    %114 = vmatprep.subr.mxu0 0.0
    %115 = vmatpush1.msra.mxu0 0.0
    %116 = vmatprep.subr.mxu0 0.0
    %117 = vmatpush1.msra.mxu0 0.0
    %118 = vmatprep.mubr.f32.mxu0 0.0
    %119 = vmatmul.mubr.f32.gmra.mrb[0].mxu0 %v52
    %v120 = vpop.f32.mrb[0].mxu0
    %v121 = vadd.f32 %v48, %v120
    %v122 = vpop.f32.mrb[0].mxu0
    %123 = vdwg.mxu0
    %v124 = vld [vmem:[#allocation3] sm:$0xff]
    %v125 = vld [vmem:[#allocation3 + $0x8] sm:$0xff]
    %v126 = vld [vmem:[#allocation3 + $0x10] sm:$0xff]
    %v127 = vld [vmem:[#allocation3 + $0x18] sm:$0xff]
    %v128 = vxor.u32 %v121, 2147483648
    %v129 = vmul.f32 %v128, 1.442695
    %v130 = vpow.pop %v129
    %v131 = vadd.f32 %v130, 1.0
    %v132 = vrcp.pop %v131
    %v133 = vmul.f32 1.0, %v132
    %v134 = vtanh.pop %v121
    %136 = vrot.lane.b32.xlu0 %v134, 64
    %v137 = vpop.permute.xlu0 %136
    %v139 = vmul.f32 %v133, %v137
    %v140 = vtanh.pop %v139
    %142 = vrot.lane.b32.xlu0 %v140, 96
    %v143 = vpop.permute.xlu0 %142
    %v145 = vmul.f32 %v133, %v143
    %147 = vrot.lane.b32.xlu0 %v145, 32
    %v148 = vpop.permute.xlu0 %147
    %vm150 = vcmask 254976
    %151 = vst.msk [vmem:[#allocation2] sm:$0x3] %vm150, %v148
    %v152 = vsel %vm50, %v148, 0
    %154 = vmatprep.subr.mxu0 0.0
    %155 = vmatpush1.msra.mxu0 %v124
    %156 = vmatprep.subr.mxu0 0.0
    %157 = vmatpush1.msra.mxu0 %v125
    %158 = vmatprep.subr.mxu0 0.0
    %159 = vmatpush1.msra.mxu0 %v126
    %160 = vmatprep.subr.mxu0 0.0
    %161 = vmatpush1.msra.mxu0 %v127
    %162 = vmatprep.subr.mxu0 0.0
    %163 = vmatpush1.msra.mxu0 0.0
    %164 = vmatprep.subr.mxu0 0.0
    %165 = vmatpush1.msra.mxu0 0.0
    %166 = vmatprep.subr.mxu0 0.0
    %167 = vmatpush1.msra.mxu0 0.0
    %168 = vmatprep.subr.mxu0 0.0
    %169 = vmatpush1.msra.mxu0 0.0
    %170 = vmatprep.subr.mxu0 0.0
    %171 = vmatpush1.msra.mxu0 0.0
    %172 = vmatprep.subr.mxu0 0.0
    %173 = vmatpush1.msra.mxu0 0.0
    %174 = vmatprep.subr.mxu0 0.0
    %175 = vmatpush1.msra.mxu0 0.0
    %176 = vmatprep.subr.mxu0 0.0
    %177 = vmatpush1.msra.mxu0 0.0
    %178 = vmatprep.subr.mxu0 0.0
    %179 = vmatpush1.msra.mxu0 0.0
    %180 = vmatprep.subr.mxu0 0.0
    %181 = vmatpush1.msra.mxu0 0.0
    %182 = vmatprep.subr.mxu0 0.0
    %183 = vmatpush1.msra.mxu0 0.0
    %184 = vmatprep.subr.mxu0 0.0
    %185 = vmatpush1.msra.mxu0 0.0
    %186 = vmatprep.subr.mxu0 0.0
    %187 = vmatpush1.msra.mxu0 0.0
    %188 = vmatprep.subr.mxu0 0.0
    %189 = vmatpush1.msra.mxu0 0.0
    %190 = vmatprep.subr.mxu0 0.0
    %191 = vmatpush1.msra.mxu0 0.0
    %192 = vmatprep.subr.mxu0 0.0
    %193 = vmatpush1.msra.mxu0 0.0
    %194 = vmatprep.subr.mxu0 0.0
    %195 = vmatpush1.msra.mxu0 0.0
    %196 = vmatprep.subr.mxu0 0.0
    %197 = vmatpush1.msra.mxu0 0.0
    %198 = vmatprep.subr.mxu0 0.0
    %199 = vmatpush1.msra.mxu0 0.0
    %200 = vmatprep.subr.mxu0 0.0
    %201 = vmatpush1.msra.mxu0 0.0
    %202 = vmatprep.subr.mxu0 0.0
    %203 = vmatpush1.msra.mxu0 0.0
    %204 = vmatprep.subr.mxu0 0.0
    %205 = vmatpush1.msra.mxu0 0.0
    %206 = vmatprep.subr.mxu0 0.0
    %207 = vmatpush1.msra.mxu0 0.0
    %208 = vmatprep.subr.mxu0 0.0
    %209 = vmatpush1.msra.mxu0 0.0
    %210 = vmatprep.subr.mxu0 0.0
    %211 = vmatpush1.msra.mxu0 0.0
    %212 = vmatprep.subr.mxu0 0.0
    %213 = vmatpush1.msra.mxu0 0.0
    %214 = vmatprep.subr.mxu0 0.0
    %215 = vmatpush1.msra.mxu0 0.0
    %216 = vmatprep.subr.mxu0 0.0
    %217 = vmatpush1.msra.mxu0 0.0
    %218 = vmatprep.mubr.f32.mxu0 0.0
    %219 = vmatmul.mubr.f32.gmra.mrb[0].mxu0 %v152
    %v220 = vpop.f32.mrb[0].mxu0
    %v221 = vadd.f32 0.0, %v220
    %v222 = vpop.f32.mrb[0].mxu0
    %223 = vdwg.mxu0
    %v224 = vadd.f32 %v121, %v221
    %v225 = vxor.u32 %v224, 2147483648
    %v226 = vmul.f32 %v225, 1.442695
    %v227 = vpow.pop %v226
    %v228 = vadd.f32 %v227, 1.0
    %v229 = vrcp.pop %v228
    %v230 = vmul.f32 1.0, %v229
    %v231 = vtanh.pop %v224
    %233 = vrot.lane.b32.xlu0 %v139, 32
    %v234 = vpop.permute.xlu0 %233
    %v236 = vmul.f32 %v230, %v234
    %238 = vrot.lane.b32.xlu0 %v231, 64
    %v239 = vpop.permute.xlu0 %238
    %v241 = vmul.f32 %v230, %v239
    %243 = vrot.lane.b32.xlu0 %v241, 32
    %v244 = vpop.permute.xlu0 %243
    %v246 = vadd.f32 %v236, %v244
    %v247 = vtanh.pop %v246
    %249 = vrot.lane.b32.xlu0 %v247, 64
    %v250 = vpop.permute.xlu0 %249
    %v252 = vmul.f32 %v230, %v250
    %254 = vrot.lane.b32.xlu0 %v252, 32
    %v255 = vpop.permute.xlu0 %254
    %257 = vst.msk [vmem:[#allocation2 + $0x2] sm:$0x3] %vm150, %v255
    %v258 = vsel %vm50, %v255, 0
    %260 = vmatprep.subr.mxu0 0.0
    %261 = vmatpush1.msra.mxu0 %v124
    %262 = vmatprep.subr.mxu0 0.0
    %263 = vmatpush1.msra.mxu0 %v125
    %264 = vmatprep.subr.mxu0 0.0
    %265 = vmatpush1.msra.mxu0 %v126
    %266 = vmatprep.subr.mxu0 0.0
    %267 = vmatpush1.msra.mxu0 %v127
    %268 = vmatprep.subr.mxu0 0.0
    %269 = vmatpush1.msra.mxu0 0.0
    %270 = vmatprep.subr.mxu0 0.0
    %271 = vmatpush1.msra.mxu0 0.0
    %272 = vmatprep.subr.mxu0 0.0
    %273 = vmatpush1.msra.mxu0 0.0
    %274 = vmatprep.subr.mxu0 0.0
    %275 = vmatpush1.msra.mxu0 0.0
    %276 = vmatprep.subr.mxu0 0.0
    %277 = vmatpush1.msra.mxu0 0.0
    %278 = vmatprep.subr.mxu0 0.0
    %279 = vmatpush1.msra.mxu0 0.0
    %280 = vmatprep.subr.mxu0 0.0
    %281 = vmatpush1.msra.mxu0 0.0
    %282 = vmatprep.subr.mxu0 0.0
    %283 = vmatpush1.msra.mxu0 0.0
    %284 = vmatprep.subr.mxu0 0.0
    %285 = vmatpush1.msra.mxu0 0.0
    %286 = vmatprep.subr.mxu0 0.0
    %287 = vmatpush1.msra.mxu0 0.0
    %288 = vmatprep.subr.mxu0 0.0
    %289 = vmatpush1.msra.mxu0 0.0
    %290 = vmatprep.subr.mxu0 0.0
    %291 = vmatpush1.msra.mxu0 0.0
    %292 = vmatprep.subr.mxu0 0.0
    %293 = vmatpush1.msra.mxu0 0.0
    %294 = vmatprep.subr.mxu0 0.0
    %295 = vmatpush1.msra.mxu0 0.0
    %296 = vmatprep.subr.mxu0 0.0
    %297 = vmatpush1.msra.mxu0 0.0
    %298 = vmatprep.subr.mxu0 0.0
    %299 = vmatpush1.msra.mxu0 0.0
    %300 = vmatprep.subr.mxu0 0.0
    %301 = vmatpush1.msra.mxu0 0.0
    %302 = vmatprep.subr.mxu0 0.0
    %303 = vmatpush1.msra.mxu0 0.0
    %304 = vmatprep.subr.mxu0 0.0
    %305 = vmatpush1.msra.mxu0 0.0
    %306 = vmatprep.subr.mxu0 0.0
    %307 = vmatpush1.msra.mxu0 0.0
    %308 = vmatprep.subr.mxu0 0.0
    %309 = vmatpush1.msra.mxu0 0.0
    %310 = vmatprep.subr.mxu0 0.0
    %311 = vmatpush1.msra.mxu0 0.0
    %312 = vmatprep.subr.mxu0 0.0
    %313 = vmatpush1.msra.mxu0 0.0
    %314 = vmatprep.subr.mxu0 0.0
    %315 = vmatpush1.msra.mxu0 0.0
    %316 = vmatprep.subr.mxu0 0.0
    %317 = vmatpush1.msra.mxu0 0.0
    %318 = vmatprep.subr.mxu0 0.0
    %319 = vmatpush1.msra.mxu0 0.0
    %320 = vmatprep.subr.mxu0 0.0
    %321 = vmatpush1.msra.mxu0 0.0
    %322 = vmatprep.subr.mxu0 0.0
    %323 = vmatpush1.msra.mxu0 0.0
    %324 = vmatprep.mubr.f32.mxu0 0.0
    %325 = vmatmul.mubr.f32.gmra.mrb[0].mxu0 %v258
    %v326 = vpop.f32.mrb[0].mxu0
    %v327 = vadd.f32 0.0, %v326
    %v328 = vpop.f32.mrb[0].mxu0
    %329 = vdwg.mxu0
    %v330 = vadd.f32 %v121, %v327
    %v331 = vxor.u32 %v330, 2147483648
    %v332 = vmul.f32 %v331, 1.442695
    %v333 = vpow.pop %v332
    %v334 = vadd.f32 %v333, 1.0
    %v335 = vrcp.pop %v334
    %v336 = vmul.f32 1.0, %v335
    %v337 = vtanh.pop %v330
    %v338 = vmul.f32 %v336, %v246
    %340 = vrot.lane.b32.xlu0 %v337, 64
    %v341 = vpop.permute.xlu0 %340
    %v343 = vmul.f32 %v336, %v341
    %345 = vrot.lane.b32.xlu0 %v343, 32
    %v346 = vpop.permute.xlu0 %345
    %v348 = vadd.f32 %v338, %v346
    %v349 = vtanh.pop %v348
    %351 = vrot.lane.b32.xlu0 %v349, 64
    %v352 = vpop.permute.xlu0 %351
    %v354 = vmul.f32 %v336, %v352
    %356 = vrot.lane.b32.xlu0 %v354, 32
    %v357 = vpop.permute.xlu0 %356
    %359 = vst.msk [vmem:[#allocation2 + $0x4] sm:$0x3] %vm150, %v357
    %v360 = vsel %vm50, %v357, 0
    %362 = vmatprep.subr.mxu0 0.0
    %363 = vmatpush1.msra.mxu0 %v124
    %364 = vmatprep.subr.mxu0 0.0
    %365 = vmatpush1.msra.mxu0 %v125
    %366 = vmatprep.subr.mxu0 0.0
    %367 = vmatpush1.msra.mxu0 %v126
    %368 = vmatprep.subr.mxu0 0.0
    %369 = vmatpush1.msra.mxu0 %v127
    %370 = vmatprep.subr.mxu0 0.0
    %371 = vmatpush1.msra.mxu0 0.0
    %372 = vmatprep.subr.mxu0 0.0
    %373 = vmatpush1.msra.mxu0 0.0
    %374 = vmatprep.subr.mxu0 0.0
    %375 = vmatpush1.msra.mxu0 0.0
    %376 = vmatprep.subr.mxu0 0.0
    %377 = vmatpush1.msra.mxu0 0.0
    %378 = vmatprep.subr.mxu0 0.0
    %379 = vmatpush1.msra.mxu0 0.0
    %380 = vmatprep.subr.mxu0 0.0
    %381 = vmatpush1.msra.mxu0 0.0
    %382 = vmatprep.subr.mxu0 0.0
    %383 = vmatpush1.msra.mxu0 0.0
    %384 = vmatprep.subr.mxu0 0.0
    %385 = vmatpush1.msra.mxu0 0.0
    %386 = vmatprep.subr.mxu0 0.0
    %387 = vmatpush1.msra.mxu0 0.0
    %388 = vmatprep.subr.mxu0 0.0
    %389 = vmatpush1.msra.mxu0 0.0
    %390 = vmatprep.subr.mxu0 0.0
    %391 = vmatpush1.msra.mxu0 0.0
    %392 = vmatprep.subr.mxu0 0.0
    %393 = vmatpush1.msra.mxu0 0.0
    %394 = vmatprep.subr.mxu0 0.0
    %395 = vmatpush1.msra.mxu0 0.0
    %396 = vmatprep.subr.mxu0 0.0
    %397 = vmatpush1.msra.mxu0 0.0
    %398 = vmatprep.subr.mxu0 0.0
    %399 = vmatpush1.msra.mxu0 0.0
    %400 = vmatprep.subr.mxu0 0.0
    %401 = vmatpush1.msra.mxu0 0.0
    %402 = vmatprep.subr.mxu0 0.0
    %403 = vmatpush1.msra.mxu0 0.0
    %404 = vmatprep.subr.mxu0 0.0
    %405 = vmatpush1.msra.mxu0 0.0
    %406 = vmatprep.subr.mxu0 0.0
    %407 = vmatpush1.msra.mxu0 0.0
    %408 = vmatprep.subr.mxu0 0.0
    %409 = vmatpush1.msra.mxu0 0.0
    %410 = vmatprep.subr.mxu0 0.0
    %411 = vmatpush1.msra.mxu0 0.0
    %412 = vmatprep.subr.mxu0 0.0
    %413 = vmatpush1.msra.mxu0 0.0
    %414 = vmatprep.subr.mxu0 0.0
    %415 = vmatpush1.msra.mxu0 0.0
    %416 = vmatprep.subr.mxu0 0.0
    %417 = vmatpush1.msra.mxu0 0.0
    %418 = vmatprep.subr.mxu0 0.0
    %419 = vmatpush1.msra.mxu0 0.0
    %420 = vmatprep.subr.mxu0 0.0
    %421 = vmatpush1.msra.mxu0 0.0
    %422 = vmatprep.subr.mxu0 0.0
    %423 = vmatpush1.msra.mxu0 0.0
    %424 = vmatprep.subr.mxu0 0.0
    %425 = vmatpush1.msra.mxu0 0.0
    %426 = vmatprep.mubr.f32.mxu0 0.0
    %427 = vmatmul.mubr.f32.gmra.mrb[0].mxu0 %v360
    %v428 = vpop.f32.mrb[0].mxu0
    %v429 = vadd.f32 0.0, %v428
    %v430 = vpop.f32.mrb[0].mxu0
    %431 = vdwg.mxu0
    %v432 = vadd.f32 %v121, %v429
    %v433 = vxor.u32 %v432, 2147483648
    %v434 = vmul.f32 %v433, 1.442695
    %v435 = vpow.pop %v434
    %v436 = vadd.f32 %v435, 1.0
    %v437 = vrcp.pop %v436
    %v438 = vmul.f32 1.0, %v437
    %v439 = vtanh.pop %v432
    %v440 = vmul.f32 %v438, %v348
    %442 = vrot.lane.b32.xlu0 %v439, 64
    %v443 = vpop.permute.xlu0 %442
    %v445 = vmul.f32 %v438, %v443
    %447 = vrot.lane.b32.xlu0 %v445, 32
    %v448 = vpop.permute.xlu0 %447
    %v450 = vadd.f32 %v440, %v448
    %v451 = vtanh.pop %v450
    %453 = vrot.lane.b32.xlu0 %v451, 64
    %v454 = vpop.permute.xlu0 %453
    %v456 = vmul.f32 %v438, %v454
    %458 = vrot.lane.b32.xlu0 %v456, 32
    %v459 = vpop.permute.xlu0 %458
    %461 = vst.msk [vmem:[#allocation2 + $0x6] sm:$0x3] %vm150, %v459
    %v462 = vsel %vm50, %v459, 0
    %464 = vmatprep.subr.mxu0 0.0
    %465 = vmatpush1.msra.mxu0 %v124
    %466 = vmatprep.subr.mxu0 0.0
    %467 = vmatpush1.msra.mxu0 %v125
    %468 = vmatprep.subr.mxu0 0.0
    %469 = vmatpush1.msra.mxu0 %v126
    %470 = vmatprep.subr.mxu0 0.0
    %471 = vmatpush1.msra.mxu0 %v127
    %472 = vmatprep.subr.mxu0 0.0
    %473 = vmatpush1.msra.mxu0 0.0
    %474 = vmatprep.subr.mxu0 0.0
    %475 = vmatpush1.msra.mxu0 0.0
    %476 = vmatprep.subr.mxu0 0.0
    %477 = vmatpush1.msra.mxu0 0.0
    %478 = vmatprep.subr.mxu0 0.0
    %479 = vmatpush1.msra.mxu0 0.0
    %480 = vmatprep.subr.mxu0 0.0
    %481 = vmatpush1.msra.mxu0 0.0
    %482 = vmatprep.subr.mxu0 0.0
    %483 = vmatpush1.msra.mxu0 0.0
    %484 = vmatprep.subr.mxu0 0.0
    %485 = vmatpush1.msra.mxu0 0.0
    %486 = vmatprep.subr.mxu0 0.0
    %487 = vmatpush1.msra.mxu0 0.0
    %488 = vmatprep.subr.mxu0 0.0
    %489 = vmatpush1.msra.mxu0 0.0
    %490 = vmatprep.subr.mxu0 0.0
    %491 = vmatpush1.msra.mxu0 0.0
    %492 = vmatprep.subr.mxu0 0.0
    %493 = vmatpush1.msra.mxu0 0.0
    %494 = vmatprep.subr.mxu0 0.0
    %495 = vmatpush1.msra.mxu0 0.0
    %496 = vmatprep.subr.mxu0 0.0
    %497 = vmatpush1.msra.mxu0 0.0
    %498 = vmatprep.subr.mxu0 0.0
    %499 = vmatpush1.msra.mxu0 0.0
    %500 = vmatprep.subr.mxu0 0.0
    %501 = vmatpush1.msra.mxu0 0.0
    %502 = vmatprep.subr.mxu0 0.0
    %503 = vmatpush1.msra.mxu0 0.0
    %504 = vmatprep.subr.mxu0 0.0
    %505 = vmatpush1.msra.mxu0 0.0
    %506 = vmatprep.subr.mxu0 0.0
    %507 = vmatpush1.msra.mxu0 0.0
    %508 = vmatprep.subr.mxu0 0.0
    %509 = vmatpush1.msra.mxu0 0.0
    %510 = vmatprep.subr.mxu0 0.0
    %511 = vmatpush1.msra.mxu0 0.0
    %512 = vmatprep.subr.mxu0 0.0
    %513 = vmatpush1.msra.mxu0 0.0
    %514 = vmatprep.subr.mxu0 0.0
    %515 = vmatpush1.msra.mxu0 0.0
    %516 = vmatprep.subr.mxu0 0.0
    %517 = vmatpush1.msra.mxu0 0.0
    %518 = vmatprep.subr.mxu0 0.0
    %519 = vmatpush1.msra.mxu0 0.0
    %520 = vmatprep.subr.mxu0 0.0
    %521 = vmatpush1.msra.mxu0 0.0
    %522 = vmatprep.subr.mxu0 0.0
    %523 = vmatpush1.msra.mxu0 0.0
    %524 = vmatprep.subr.mxu0 0.0
    %525 = vmatpush1.msra.mxu0 0.0
    %526 = vmatprep.subr.mxu0 0.0
    %527 = vmatpush1.msra.mxu0 0.0
    %528 = vmatprep.mubr.f32.mxu0 0.0
    %529 = vmatmul.mubr.f32.gmra.mrb[0].mxu0 %v462
    %v530 = vpop.f32.mrb[0].mxu0
    %v531 = vadd.f32 0.0, %v530
    %v532 = vpop.f32.mrb[0].mxu0
    %533 = vdwg.mxu0
    %v534 = vadd.f32 %v121, %v531
    %v535 = vxor.u32 %v534, 2147483648
    %v536 = vmul.f32 %v535, 1.442695
    %v537 = vpow.pop %v536
    %v538 = vadd.f32 %v537, 1.0
    %v539 = vrcp.pop %v538
    %v540 = vmul.f32 1.0, %v539
    %v541 = vtanh.pop %v534
    %v542 = vmul.f32 %v540, %v450
    %544 = vrot.lane.b32.xlu0 %v541, 64
    %v545 = vpop.permute.xlu0 %544
    %v547 = vmul.f32 %v540, %v545
    %549 = vrot.lane.b32.xlu0 %v547, 32
    %v550 = vpop.permute.xlu0 %549
    %v552 = vadd.f32 %v542, %v550
    %v553 = vtanh.pop %v552
    %555 = vrot.lane.b32.xlu0 %v553, 64
    %v556 = vpop.permute.xlu0 %555
    %v558 = vmul.f32 %v540, %v556
    %560 = vrot.lane.b32.xlu0 %v558, 32
    %v561 = vpop.permute.xlu0 %560
    %563 = vst.msk [vmem:[#allocation2 + $0x8] sm:$0x3] %vm150, %v561
    %v564 = vsel %vm50, %v561, 0
    %566 = vmatprep.subr.mxu0 0.0
    %567 = vmatpush1.msra.mxu0 %v124
    %568 = vmatprep.subr.mxu0 0.0
    %569 = vmatpush1.msra.mxu0 %v125
    %570 = vmatprep.subr.mxu0 0.0
    %571 = vmatpush1.msra.mxu0 %v126
    %572 = vmatprep.subr.mxu0 0.0
    %573 = vmatpush1.msra.mxu0 %v127
    %574 = vmatprep.subr.mxu0 0.0
    %575 = vmatpush1.msra.mxu0 0.0
    %576 = vmatprep.subr.mxu0 0.0
    %577 = vmatpush1.msra.mxu0 0.0
    %578 = vmatprep.subr.mxu0 0.0
    %579 = vmatpush1.msra.mxu0 0.0
    %580 = vmatprep.subr.mxu0 0.0
    %581 = vmatpush1.msra.mxu0 0.0
    %582 = vmatprep.subr.mxu0 0.0
    %583 = vmatpush1.msra.mxu0 0.0
    %584 = vmatprep.subr.mxu0 0.0
    %585 = vmatpush1.msra.mxu0 0.0
    %586 = vmatprep.subr.mxu0 0.0
    %587 = vmatpush1.msra.mxu0 0.0
    %588 = vmatprep.subr.mxu0 0.0
    %589 = vmatpush1.msra.mxu0 0.0
    %590 = vmatprep.subr.mxu0 0.0
    %591 = vmatpush1.msra.mxu0 0.0
    %592 = vmatprep.subr.mxu0 0.0
    %593 = vmatpush1.msra.mxu0 0.0
    %594 = vmatprep.subr.mxu0 0.0
    %595 = vmatpush1.msra.mxu0 0.0
    %596 = vmatprep.subr.mxu0 0.0
    %597 = vmatpush1.msra.mxu0 0.0
    %598 = vmatprep.subr.mxu0 0.0
    %599 = vmatpush1.msra.mxu0 0.0
    %600 = vmatprep.subr.mxu0 0.0
    %601 = vmatpush1.msra.mxu0 0.0
    %602 = vmatprep.subr.mxu0 0.0
    %603 = vmatpush1.msra.mxu0 0.0
    %604 = vmatprep.subr.mxu0 0.0
    %605 = vmatpush1.msra.mxu0 0.0
    %606 = vmatprep.subr.mxu0 0.0
    %607 = vmatpush1.msra.mxu0 0.0
    %608 = vmatprep.subr.mxu0 0.0
    %609 = vmatpush1.msra.mxu0 0.0
    %610 = vmatprep.subr.mxu0 0.0
    %611 = vmatpush1.msra.mxu0 0.0
    %612 = vmatprep.subr.mxu0 0.0
    %613 = vmatpush1.msra.mxu0 0.0
    %614 = vmatprep.subr.mxu0 0.0
    %615 = vmatpush1.msra.mxu0 0.0
    %616 = vmatprep.subr.mxu0 0.0
    %617 = vmatpush1.msra.mxu0 0.0
    %618 = vmatprep.subr.mxu0 0.0
    %619 = vmatpush1.msra.mxu0 0.0
    %620 = vmatprep.subr.mxu0 0.0
    %621 = vmatpush1.msra.mxu0 0.0
    %622 = vmatprep.subr.mxu0 0.0
    %623 = vmatpush1.msra.mxu0 0.0
    %624 = vmatprep.subr.mxu0 0.0
    %625 = vmatpush1.msra.mxu0 0.0
    %626 = vmatprep.subr.mxu0 0.0
    %627 = vmatpush1.msra.mxu0 0.0
    %628 = vmatprep.subr.mxu0 0.0
    %629 = vmatpush1.msra.mxu0 0.0
    %630 = vmatprep.mubr.f32.mxu0 0.0
    %631 = vmatmul.mubr.f32.gmra.mrb[0].mxu0 %v564
    %v632 = vpop.f32.mrb[0].mxu0
    %v633 = vadd.f32 0.0, %v632
    %v634 = vpop.f32.mrb[0].mxu0
    %635 = vdwg.mxu0
    %v636 = vadd.f32 %v121, %v633
    %v637 = vxor.u32 %v636, 2147483648
    %v638 = vmul.f32 %v637, 1.442695
    %v639 = vpow.pop %v638
    %v640 = vadd.f32 %v639, 1.0
    %v641 = vrcp.pop %v640
    %v642 = vmul.f32 1.0, %v641
    %v643 = vtanh.pop %v636
    %v644 = vmul.f32 %v642, %v552
    %646 = vrot.lane.b32.xlu0 %v643, 64
    %v647 = vpop.permute.xlu0 %646
    %v649 = vmul.f32 %v642, %v647
    %651 = vrot.lane.b32.xlu0 %v649, 32
    %v652 = vpop.permute.xlu0 %651
    %v654 = vadd.f32 %v644, %v652
    %v655 = vtanh.pop %v654
    %657 = vrot.lane.b32.xlu0 %v655, 64
    %v658 = vpop.permute.xlu0 %657
    %v660 = vmul.f32 %v642, %v658
    %662 = vrot.lane.b32.xlu0 %v660, 32
    %v663 = vpop.permute.xlu0 %662
    %665 = vst.msk [vmem:[#allocation2 + $0xa] sm:$0x3] %vm150, %v663
    %v666 = vsel %vm50, %v663, 0
    %668 = vmatprep.subr.mxu0 0.0
    %669 = vmatpush1.msra.mxu0 %v124
    %670 = vmatprep.subr.mxu0 0.0
    %671 = vmatpush1.msra.mxu0 %v125
    %672 = vmatprep.subr.mxu0 0.0
    %673 = vmatpush1.msra.mxu0 %v126
    %674 = vmatprep.subr.mxu0 0.0
    %675 = vmatpush1.msra.mxu0 %v127
    %676 = vmatprep.subr.mxu0 0.0
    %677 = vmatpush1.msra.mxu0 0.0
    %678 = vmatprep.subr.mxu0 0.0
    %679 = vmatpush1.msra.mxu0 0.0
    %680 = vmatprep.subr.mxu0 0.0
    %681 = vmatpush1.msra.mxu0 0.0
    %682 = vmatprep.subr.mxu0 0.0
    %683 = vmatpush1.msra.mxu0 0.0
    %684 = vmatprep.subr.mxu0 0.0
    %685 = vmatpush1.msra.mxu0 0.0
    %686 = vmatprep.subr.mxu0 0.0
    %687 = vmatpush1.msra.mxu0 0.0
    %688 = vmatprep.subr.mxu0 0.0
    %689 = vmatpush1.msra.mxu0 0.0
    %690 = vmatprep.subr.mxu0 0.0
    %691 = vmatpush1.msra.mxu0 0.0
    %692 = vmatprep.subr.mxu0 0.0
    %693 = vmatpush1.msra.mxu0 0.0
    %694 = vmatprep.subr.mxu0 0.0
    %695 = vmatpush1.msra.mxu0 0.0
    %696 = vmatprep.subr.mxu0 0.0
    %697 = vmatpush1.msra.mxu0 0.0
    %698 = vmatprep.subr.mxu0 0.0
    %699 = vmatpush1.msra.mxu0 0.0
    %700 = vmatprep.subr.mxu0 0.0
    %701 = vmatpush1.msra.mxu0 0.0
    %702 = vmatprep.subr.mxu0 0.0
    %703 = vmatpush1.msra.mxu0 0.0
    %704 = vmatprep.subr.mxu0 0.0
    %705 = vmatpush1.msra.mxu0 0.0
    %706 = vmatprep.subr.mxu0 0.0
    %707 = vmatpush1.msra.mxu0 0.0
    %708 = vmatprep.subr.mxu0 0.0
    %709 = vmatpush1.msra.mxu0 0.0
    %710 = vmatprep.subr.mxu0 0.0
    %711 = vmatpush1.msra.mxu0 0.0
    %712 = vmatprep.subr.mxu0 0.0
    %713 = vmatpush1.msra.mxu0 0.0
    %714 = vmatprep.subr.mxu0 0.0
    %715 = vmatpush1.msra.mxu0 0.0
    %716 = vmatprep.subr.mxu0 0.0
    %717 = vmatpush1.msra.mxu0 0.0
    %718 = vmatprep.subr.mxu0 0.0
    %719 = vmatpush1.msra.mxu0 0.0
    %720 = vmatprep.subr.mxu0 0.0
    %721 = vmatpush1.msra.mxu0 0.0
    %722 = vmatprep.subr.mxu0 0.0
    %723 = vmatpush1.msra.mxu0 0.0
    %724 = vmatprep.subr.mxu0 0.0
    %725 = vmatpush1.msra.mxu0 0.0
    %726 = vmatprep.subr.mxu0 0.0
    %727 = vmatpush1.msra.mxu0 0.0
    %728 = vmatprep.subr.mxu0 0.0
    %729 = vmatpush1.msra.mxu0 0.0
    %730 = vmatprep.subr.mxu0 0.0
    %731 = vmatpush1.msra.mxu0 0.0
    %732 = vmatprep.mubr.f32.mxu0 0.0
    %733 = vmatmul.mubr.f32.gmra.mrb[0].mxu0 %v666
    %v734 = vpop.f32.mrb[0].mxu0
    %v735 = vadd.f32 0.0, %v734
    %v736 = vpop.f32.mrb[0].mxu0
    %737 = vdwg.mxu0
    %v738 = vadd.f32 %v121, %v735
    %v739 = vxor.u32 %v738, 2147483648
    %v740 = vmul.f32 %v739, 1.442695
    %v741 = vpow.pop %v740
    %v742 = vadd.f32 %v741, 1.0
    %v743 = vrcp.pop %v742
    %v744 = vmul.f32 1.0, %v743
    %v745 = vtanh.pop %v738
    %v746 = vmul.f32 %v744, %v654
    %748 = vrot.lane.b32.xlu0 %v745, 64
    %v749 = vpop.permute.xlu0 %748
    %v751 = vmul.f32 %v744, %v749
    %753 = vrot.lane.b32.xlu0 %v751, 32
    %v754 = vpop.permute.xlu0 %753
    %v756 = vadd.f32 %v746, %v754
    %v757 = vtanh.pop %v756
    %759 = vrot.lane.b32.xlu0 %v757, 64
    %v760 = vpop.permute.xlu0 %759
    %v762 = vmul.f32 %v744, %v760
    %764 = vrot.lane.b32.xlu0 %v762, 32
    %v765 = vpop.permute.xlu0 %764
    %767 = vst.msk [vmem:[#allocation2 + $0xc] sm:$0x3] %vm150, %v765
    %v768 = vsel %vm50, %v765, 0
    %770 = vmatprep.subr.mxu0 0.0
    %771 = vmatpush1.msra.mxu0 %v124
    %772 = vmatprep.subr.mxu0 0.0
    %773 = vmatpush1.msra.mxu0 %v125
    %774 = vmatprep.subr.mxu0 0.0
    %775 = vmatpush1.msra.mxu0 %v126
    %776 = vmatprep.subr.mxu0 0.0
    %777 = vmatpush1.msra.mxu0 %v127
    %778 = vmatprep.subr.mxu0 0.0
    %779 = vmatpush1.msra.mxu0 0.0
    %780 = vmatprep.subr.mxu0 0.0
    %781 = vmatpush1.msra.mxu0 0.0
    %782 = vmatprep.subr.mxu0 0.0
    %783 = vmatpush1.msra.mxu0 0.0
    %784 = vmatprep.subr.mxu0 0.0
    %785 = vmatpush1.msra.mxu0 0.0
    %786 = vmatprep.subr.mxu0 0.0
    %787 = vmatpush1.msra.mxu0 0.0
    %788 = vmatprep.subr.mxu0 0.0
    %789 = vmatpush1.msra.mxu0 0.0
    %790 = vmatprep.subr.mxu0 0.0
    %791 = vmatpush1.msra.mxu0 0.0
    %792 = vmatprep.subr.mxu0 0.0
    %793 = vmatpush1.msra.mxu0 0.0
    %794 = vmatprep.subr.mxu0 0.0
    %795 = vmatpush1.msra.mxu0 0.0
    %796 = vmatprep.subr.mxu0 0.0
    %797 = vmatpush1.msra.mxu0 0.0
    %798 = vmatprep.subr.mxu0 0.0
    %799 = vmatpush1.msra.mxu0 0.0
    %800 = vmatprep.subr.mxu0 0.0
    %801 = vmatpush1.msra.mxu0 0.0
    %802 = vmatprep.subr.mxu0 0.0
    %803 = vmatpush1.msra.mxu0 0.0
    %804 = vmatprep.subr.mxu0 0.0
    %805 = vmatpush1.msra.mxu0 0.0
    %806 = vmatprep.subr.mxu0 0.0
    %807 = vmatpush1.msra.mxu0 0.0
    %808 = vmatprep.subr.mxu0 0.0
    %809 = vmatpush1.msra.mxu0 0.0
    %810 = vmatprep.subr.mxu0 0.0
    %811 = vmatpush1.msra.mxu0 0.0
    %812 = vmatprep.subr.mxu0 0.0
    %813 = vmatpush1.msra.mxu0 0.0
    %814 = vmatprep.subr.mxu0 0.0
    %815 = vmatpush1.msra.mxu0 0.0
    %816 = vmatprep.subr.mxu0 0.0
    %817 = vmatpush1.msra.mxu0 0.0
    %818 = vmatprep.subr.mxu0 0.0
    %819 = vmatpush1.msra.mxu0 0.0
    %820 = vmatprep.subr.mxu0 0.0
    %821 = vmatpush1.msra.mxu0 0.0
    %822 = vmatprep.subr.mxu0 0.0
    %823 = vmatpush1.msra.mxu0 0.0
    %824 = vmatprep.subr.mxu0 0.0
    %825 = vmatpush1.msra.mxu0 0.0
    %826 = vmatprep.subr.mxu0 0.0
    %827 = vmatpush1.msra.mxu0 0.0
    %828 = vmatprep.subr.mxu0 0.0
    %829 = vmatpush1.msra.mxu0 0.0
    %830 = vmatprep.subr.mxu0 0.0
    %831 = vmatpush1.msra.mxu0 0.0
    %832 = vmatprep.subr.mxu0 0.0
    %833 = vmatpush1.msra.mxu0 0.0
    %834 = vmatprep.mubr.f32.mxu0 0.0
    %835 = vmatmul.mubr.f32.gmra.mrb[0].mxu0 %v768
    %v836 = vpop.f32.mrb[0].mxu0
    %v837 = vadd.f32 0.0, %v836
    %v838 = vpop.f32.mrb[0].mxu0
    %839 = vdwg.mxu0
    %v840 = vadd.f32 %v121, %v837
    %v841 = vxor.u32 %v840, 2147483648
    %v842 = vmul.f32 %v841, 1.442695
    %v843 = vpow.pop %v842
    %v844 = vadd.f32 %v843, 1.0
    %v845 = vrcp.pop %v844
    %v846 = vmul.f32 1.0, %v845
    %v847 = vtanh.pop %v840
    %v848 = vmul.f32 %v846, %v756
    %850 = vrot.lane.b32.xlu0 %v847, 64
    %v851 = vpop.permute.xlu0 %850
    %v853 = vmul.f32 %v846, %v851
    %855 = vrot.lane.b32.xlu0 %v853, 32
    %v856 = vpop.permute.xlu0 %855
    %v858 = vadd.f32 %v848, %v856
    %v859 = vtanh.pop %v858
    %861 = vrot.lane.b32.xlu0 %v859, 64
    %v862 = vpop.permute.xlu0 %861
    %v864 = vmul.f32 %v846, %v862
    %866 = vrot.lane.b32.xlu0 %v864, 32
    %v867 = vpop.permute.xlu0 %866
    %869 = vst.msk [vmem:[#allocation2 + $0xe] sm:$0x3] %vm150, %v867
    %v870 = vld [vmem:[#allocation2] sm:$0xff]
    %v871 = vld [vmem:[#allocation2 + $0x8] sm:$0xff]
    %v872 = vld [vmem:[%s4] sm:$0xff]
    %v873 = vld [vmem:[%s4 + $0x8] sm:$0xff]
    %v874 = vld [vmem:[%s4 + $0x10] sm:$0xff]
    %v875 = vld [vmem:[%s4 + $0x18] sm:$0xff]
    %v876 = vld [vmem:[%s5] sm:$0x1]
    %v878 = vlaneseq
    %v879 = vshrl.u32 %v878, 7
    %v880 = vsub.s32 0, %v879
    %v881 = vrot.slane %v876, %v880
    %v884 = vsel %vm50, %v870, 0
    %v887 = vsel %vm50, %v871, 0
    %889 = vmatprep.subr.mxu0 0.0
    %890 = vmatpush1.msra.mxu0 %v872
    %891 = vmatprep.subr.mxu0 0.0
    %892 = vmatpush1.msra.mxu0 %v873
    %893 = vmatprep.subr.mxu0 0.0
    %894 = vmatpush1.msra.mxu0 %v874
    %895 = vmatprep.subr.mxu0 0.0
    %896 = vmatpush1.msra.mxu0 %v875
    %897 = vmatprep.subr.mxu0 0.0
    %898 = vmatpush1.msra.mxu0 0.0
    %899 = vmatprep.subr.mxu0 0.0
    %900 = vmatpush1.msra.mxu0 0.0
    %901 = vmatprep.subr.mxu0 0.0
    %902 = vmatpush1.msra.mxu0 0.0
    %903 = vmatprep.subr.mxu0 0.0
    %904 = vmatpush1.msra.mxu0 0.0
    %905 = vmatprep.subr.mxu0 0.0
    %906 = vmatpush1.msra.mxu0 0.0
    %907 = vmatprep.subr.mxu0 0.0
    %908 = vmatpush1.msra.mxu0 0.0
    %909 = vmatprep.subr.mxu0 0.0
    %910 = vmatpush1.msra.mxu0 0.0
    %911 = vmatprep.subr.mxu0 0.0
    %912 = vmatpush1.msra.mxu0 0.0
    %913 = vmatprep.subr.mxu0 0.0
    %914 = vmatpush1.msra.mxu0 0.0
    %915 = vmatprep.subr.mxu0 0.0
    %916 = vmatpush1.msra.mxu0 0.0
    %917 = vmatprep.subr.mxu0 0.0
    %918 = vmatpush1.msra.mxu0 0.0
    %919 = vmatprep.subr.mxu0 0.0
    %920 = vmatpush1.msra.mxu0 0.0
    %921 = vmatprep.subr.mxu0 0.0
    %922 = vmatpush1.msra.mxu0 0.0
    %923 = vmatprep.subr.mxu0 0.0
    %924 = vmatpush1.msra.mxu0 0.0
    %925 = vmatprep.subr.mxu0 0.0
    %926 = vmatpush1.msra.mxu0 0.0
    %927 = vmatprep.subr.mxu0 0.0
    %928 = vmatpush1.msra.mxu0 0.0
    %929 = vmatprep.subr.mxu0 0.0
    %930 = vmatpush1.msra.mxu0 0.0
    %931 = vmatprep.subr.mxu0 0.0
    %932 = vmatpush1.msra.mxu0 0.0
    %933 = vmatprep.subr.mxu0 0.0
    %934 = vmatpush1.msra.mxu0 0.0
    %935 = vmatprep.subr.mxu0 0.0
    %936 = vmatpush1.msra.mxu0 0.0
    %937 = vmatprep.subr.mxu0 0.0
    %938 = vmatpush1.msra.mxu0 0.0
    %939 = vmatprep.subr.mxu0 0.0
    %940 = vmatpush1.msra.mxu0 0.0
    %941 = vmatprep.subr.mxu0 0.0
    %942 = vmatpush1.msra.mxu0 0.0
    %943 = vmatprep.subr.mxu0 0.0
    %944 = vmatpush1.msra.mxu0 0.0
    %945 = vmatprep.subr.mxu0 0.0
    %946 = vmatpush1.msra.mxu0 0.0
    %947 = vmatprep.subr.mxu0 0.0
    %948 = vmatpush1.msra.mxu0 0.0
    %949 = vmatprep.subr.mxu0 0.0
    %950 = vmatpush1.msra.mxu0 0.0
    %951 = vmatprep.subr.mxu0 0.0
    %952 = vmatpush1.msra.mxu0 0.0
    %953 = vmatprep.mubr.f32.mxu0 0.0
    %954 = vmatmul.mubr.f32.gmra.mrb[0].mxu0 %v884
    %v955 = vpop.f32.mrb[0].mxu0
    %v956 = vadd.f32 %v881, %v955
    %v957 = vpop.f32.mrb[0].mxu0
    %958 = vmatprep.mubr.f32.mxu0 0.0
    %959 = vmatmul.mubr.f32.gmra.mrb[0].mxu0 %v887
    %v960 = vpop.f32.mrb[0].mxu0
    %v961 = vadd.f32 %v881, %v960
    %v962 = vpop.f32.mrb[0].mxu0
    %963 = vdwg.mxu0
    %vm964 = vcmask 130048
    %965 = vst.msk [vmem:[#allocation6] sm:$0xff] %vm964, %v956
    %966 = vst.msk [vmem:[#allocation6 + $0x8] sm:$0xff] %vm964, %v961
    // Predicated region
    $region30: #{tpu_custom_call.1} parent=1 // pred_check
      _
    $region31: #{tpu_custom_call.1} parent=1 // pred_check_branch
      %968 = sbr.rel (0) target = $region33
    $region32: #{tpu_custom_call.1} parent=1 // pred_region
      %s970 = ssub.s32 256, 256
      %971 = vsyncadd [#allocation5], %s970
      %s972 = sshll.u32 [#allocation6], 4
      %s973 = int_to_ptr.vmem [resolvable:$true] %s972
      %978 = dma.vmem_to_hbm [thread:$0]  %s973, 256, %s6, [#allocation5], 128, 128, 8
    $region33: #{tpu_custom_call.1} parent=1 // pred_fallthru
      _
    // Predicated region
    $region34: #{tpu_custom_call.1} parent=1 // pred_check
      _
    $region35: #{tpu_custom_call.1} parent=1 // pred_check_branch
      %980 = sbr.rel (0) target = $region37
    $region36: #{tpu_custom_call.1} parent=1 // pred_region
      %981 = dma.done [#allocation5], 256
    $region37: #{tpu_custom_call.1} parent=1 // pred_fallthru
      _
    %982 = vsyncpa [#allocation4], 1
    %983 = vsyncpa [#allocation5], 1

</llo_original>
